<compile_context>
chip_gen: v7x
topology: tpu7x:2x2x1
jax: 0.10.0
libtpu: 0.0.40
codegen_flags: <defaults>
</compile_context>

<pallas_src>
import math

import jax
import jax.numpy as jnp
from jax import lax
from jax.experimental import pallas as pl
from jax.experimental.pallas import tpu as pltpu


def _pe_lane_tables(P: int, d: int) -> jax.Array:
    """Packed (2, P*d) f32 table: row 0 = node-index coefficient, row 1 = constant angle.

    pe[n, p, c] = sin(n * scale[p*d + c] + base[p*d + c]) reproduces
    PositionalEncoding2D(num_feat=d) over an (N, P) grid:
      channels [0, ch)      : interleaved sin/cos of n * inv_freq   (x / node axis)
      channels [ch, 2*ch)   : interleaved sin/cos of p * inv_freq   (y / patch axis)
    with ch = ceil(d/4)*2, sliced to the first d channels.  Cosine channels are
    encoded as a +pi/2 phase so the kernel needs a single sin() per element.
    """
    ch = int(math.ceil(d / 4) * 2)
    inv_freq = 1.0 / (10000.0 ** (jnp.arange(0, ch, 2, dtype=jnp.float32) / ch))  # [ch//2]
    freq_half = jnp.repeat(inv_freq, 2)                                           # [ch]
    freq_full = jnp.concatenate([freq_half, freq_half])[:d]                       # [d]
    phase_full = jnp.tile(jnp.array([0.0, math.pi / 2.0], jnp.float32), ch)[:d]   # [d]
    is_x = jnp.arange(d) < ch                                                     # [d]

    n_coeff = jnp.where(is_x, freq_full, 0.0)           # multiplies the node index n
    p_coeff = jnp.where(is_x, 0.0, freq_full)           # multiplies the patch index p
    p_idx = jnp.arange(P, dtype=jnp.float32)[:, None]   # [P, 1]

    scale = jnp.broadcast_to(n_coeff[None, :], (P, d)).reshape(1, P * d)
    base = (p_idx * p_coeff[None, :] + phase_full[None, :]).reshape(1, P * d)
    return jnp.concatenate([scale, base], axis=0)       # [2, P*d], float32


def _choose_row_tile(N: int, PD: int, itemsize: int, budget_bytes: int = 24 << 20) -> int:
    """Pick an N-tile: sublane-aligned, fits a VMEM budget, >=2 tiles for large N."""
    itemsize = int(itemsize)
    q = max(8, 32 // max(itemsize, 1))          # sublane quantum: 8 f32, 16 bf16, 32 int8
    # 2x double-buffered blocks each for x / out / pe + 1 pe scratch block.
    per_row = 7 * PD * itemsize
    cap = max(q, (budget_bytes // per_row) // q * q)
    if N <= cap:
        if N >= 1024:
            # Split into >=2 parallel N-tiles for the second TensorCore (v7x);
            # negligible overhead on 1-TC chips.
            half = ((pl.cdiv(N, 2) + q - 1) // q) * q
            return min(half, cap)
        return N                                 # block == full dim: always legal
    return cap                                   # cdiv grid; ragged last tile is masked


def _pe_kernel(tbl_ref, x_ref, out_ref, pe_ref, pe_scr):
    # Block shapes (leading batch dim squeezed): x/out/pe (TN, PD), tbl (2, PD).
    tn, pd = x_ref.shape
    b = pl.program_id(1)
    # NOTE: program_id must be read at the top level of the kernel (not inside
    # the pl.when branch) so it is substituted correctly on every lowering path.
    n0 = pl.program_id(0) * tn                   # first node index of this N-tile

    @pl.when(b == 0)
    def _():
        scale = tbl_ref[0:1, :]                  # (1, PD) f32
        base = tbl_ref[1:2, :]                   # (1, PD) f32
        # Node index per row (exact for realistic N).
        n = (lax.broadcasted_iota(jnp.int32, (tn, pd), 0) + n0).astype(jnp.float32)
        # Single transcendental: cos channels carry a +pi/2 phase in `base`.
        pe_scr[...] = jnp.sin(n * scale + base).astype(pe_scr.dtype)

    pe = pe_scr[...]                             # resident across the batch axis
    pe_ref[...] = pe                             # per-batch pe output (no XLA broadcast)
    # Matches torch semantics: pe is cast to the input dtype before the add.
    out_ref[...] = x_ref[...] + pe


def positional_encoding(input_data):
    """Pallas equivalent of PositionalEncoding.forward.

    Args:
        input_data: [B, N, P, d] array.
    Returns:
        (input_data + pe, pe), both [B, N, P, d].
    """
    B, N, P, d = input_data.shape
    PD = P * d
    dtype = input_data.dtype
    itemsize = jnp.dtype(dtype).itemsize

    tbl = _pe_lane_tables(P, d)                  # (2, PD) f32
    x_flat = input_data.reshape(B, N, PD)        # free view: [P, d] are contiguous

    TN = _choose_row_tile(N, PD, itemsize)
    n_tiles = pl.cdiv(N, TN)

    tbl_spec = pl.BlockSpec((2, PD), lambda i, b: (0, 0))
    x_spec = pl.BlockSpec((None, TN, PD), lambda i, b: (b, i, 0))
    out_spec = pl.BlockSpec((None, TN, PD), lambda i, b: (b, i, 0))
    pe_spec = pl.BlockSpec((None, TN, PD), lambda i, b: (b, i, 0))

    cost = pl.CostEstimate(
        flops=int(B * N * PD + 2 * N * PD),
        transcendentals=int(N * PD),
        bytes_accessed=int(3 * B * N * PD * itemsize + 2 * PD * 4),
    )

    out_flat, pe_flat = pl.pallas_call(
        _pe_kernel,
        out_shape=(
            jax.ShapeDtypeStruct((B, N, PD), dtype),
            jax.ShapeDtypeStruct((B, N, PD), dtype),
        ),
        grid=(n_tiles, B),                       # B innermost: pe computed once per N-tile
        in_specs=[tbl_spec, x_spec],
        out_specs=(out_spec, pe_spec),
        scratch_shapes=[pltpu.VMEM((TN, PD), dtype)],
        compiler_params=pltpu.CompilerParams(
            dimension_semantics=("parallel", "arbitrary"),
            vmem_limit_bytes=32 * 1024 * 1024,
        ),
        cost_estimate=cost,
    )(tbl, x_flat)

    out = out_flat.reshape(B, N, P, d)
    pe = pe_flat.reshape(B, N, P, d)
    return out, pe


def _reference_pe(B, N, P, d, dtype):
    """Pure-JAX reference of PositionalEncoding2D for verification."""
    ch = int(math.ceil(d / 4) * 2)
    inv_freq = 1.0 / (10000.0 ** (jnp.arange(0, ch, 2, dtype=jnp.float32) / ch))
    pos_x = jnp.arange(N, dtype=jnp.float32)
    pos_y = jnp.arange(P, dtype=jnp.float32)
    sin_inp_x = jnp.einsum("i,j->ij", pos_x, inv_freq)  # [N, ch//2]
    sin_inp_y = jnp.einsum("i,j->ij", pos_y, inv_freq)  # [P, ch//2]

    def get_emb(s):
        return jnp.stack((jnp.sin(s), jnp.cos(s)), axis=-1).reshape(s.shape[0], -1)

    emb_x = get_emb(sin_inp_x)[:, None, :]                     # [N, 1, ch]
    emb_y = get_emb(sin_inp_y)[None, :, :]                     # [1, P, ch]
    emb = jnp.zeros((N, P, 2 * ch), jnp.float32)
    emb = emb.at[:, :, :ch].set(jnp.broadcast_to(emb_x, (N, P, ch)))
    emb = emb.at[:, :, ch:2 * ch].set(jnp.broadcast_to(emb_y, (N, P, ch)))
    pe = jnp.broadcast_to(emb[None, :, :, :d], (B, N, P, d)).astype(dtype)
    return pe


if __name__ == "__main__":
    key = jax.random.PRNGKey(0)
    B, N, P, d = 2, 4, 16, 16
    x = jax.random.normal(key, (B, N, P, d), dtype=jnp.float32)

    out, pe = positional_encoding(x)
    out, pe = jax.block_until_ready((out, pe))

    pe_ref = _reference_pe(B, N, P, d, x.dtype)
    assert pe.shape == (B, N, P, d) and out.shape == (B, N, P, d)
    assert jnp.allclose(pe, pe_ref, atol=1e-5), "pe mismatch vs reference"
    assert jnp.allclose(out, x + pe_ref, atol=1e-5), "output mismatch vs reference"
    print("KERNEL_OK")
</pallas_src>

<mosaic_0001>
module attributes {stable_mosaic.version = 11 : i64} {
  func.func @_pe_kernel(%arg0: i32, %arg1: i32, %arg2: memref<2x256xf32, #tpu.memory_space<vmem>>, %arg3: memref<1x4x256xf32, #tpu.memory_space<vmem>>, %arg4: memref<1x4x256xf32, #tpu.memory_space<vmem>>, %arg5: memref<1x4x256xf32, #tpu.memory_space<vmem>>, %arg6: memref<4x256xf32, #tpu.memory_space<vmem>>) attributes {dimension_semantics = [#tpu.dimension_semantics<parallel>, #tpu.dimension_semantics<arbitrary>], iteration_bounds = array<i64: 1, 2>, scalar_prefetch = 0 : i64, scratch_operands = 1 : i64, tpu.core_type = #tpu.core_type<tc>, window_params = [{pipeline_mode = #tpu.pipeline_mode<synchronous>, transform_indices = @transform_0, window_bounds = array<i64: 2, 256>}, {transform_indices = @transform_1, window_bounds = array<i64: 1, 4, 256>}, {transform_indices = @transform_2, window_bounds = array<i64: 1, 4, 256>}, {transform_indices = @transform_3, window_bounds = array<i64: 1, 4, 256>}]} {
    %c4_i32 = arith.constant 4 : i32
    %0 = arith.muli %arg0, %c4_i32 : i32
    %c0_i32 = arith.constant 0 : i32
    %1 = arith.cmpi eq, %arg1, %c0_i32 : i32
    %2 = arith.extui %1 : i1 to i32
    %c0_i32_0 = arith.constant 0 : i32
    %3 = arith.cmpi ne, %2, %c0_i32_0 : i32
    scf.if %3 {
      %c0_11 = arith.constant 0 : index
      %c0_12 = arith.constant 0 : index
      %14 = vector.load %arg2[%c0_11, %c0_12] : memref<2x256xf32, #tpu.memory_space<vmem>>, vector<1x256xf32>
      %c1 = arith.constant 1 : index
      %c0_13 = arith.constant 0 : index
      %15 = vector.load %arg2[%c1, %c0_13] : memref<2x256xf32, #tpu.memory_space<vmem>>, vector<1x256xf32>
      %16 = tpu.iota {dimensions = array<i32: 0>} : vector<4x256xi32>
      %17 = vector.broadcast %0 : i32 to vector<4x256xi32>
      %18 = arith.addi %16, %17 : vector<4x256xi32>
      %19 = arith.sitofp %18 : vector<4x256xi32> to vector<4x256xf32>
      %20 = vector.broadcast %14 : vector<1x256xf32> to vector<4x256xf32>
      %21 = arith.mulf %19, %20 : vector<4x256xf32>
      %22 = vector.broadcast %15 : vector<1x256xf32> to vector<4x256xf32>
      %23 = arith.addf %21, %22 : vector<4x256xf32>
      %24 = math.sin %23 : vector<4x256xf32>
      %c0_14 = arith.constant 0 : index
      %c0_15 = arith.constant 0 : index
      %25 = vector.load %arg6[%c0_14, %c0_15] : memref<4x256xf32, #tpu.memory_space<vmem>>, vector<4x256xf32>
      tpu.vector_store %arg6[%c0_14, %c0_15], %24 {strides = array<i32>} : memref<4x256xf32, #tpu.memory_space<vmem>>, vector<4x256xf32>,
    } else {
    }
    %c0 = arith.constant 0 : index
    %c0_1 = arith.constant 0 : index
    %4 = vector.load %arg6[%c0, %c0_1] : memref<4x256xf32, #tpu.memory_space<vmem>>, vector<4x256xf32>
    %c0_2 = arith.constant 0 : index
    %c0_3 = arith.constant 0 : index
    %c0_4 = arith.constant 0 : index
    %5 = vector.load %arg5[%c0_2, %c0_3, %c0_4] : memref<1x4x256xf32, #tpu.memory_space<vmem>>, vector<1x4x256xf32>
    %6 = vector.shape_cast %5 : vector<1x4x256xf32> to vector<4x256xf32>
    %7 = vector.shape_cast %4 : vector<4x256xf32> to vector<1x4x256xf32>
    tpu.vector_store %arg5[%c0_2, %c0_3, %c0_4], %7 {strides = array<i32>} : memref<1x4x256xf32, #tpu.memory_space<vmem>>, vector<1x4x256xf32>,
    %c0_5 = arith.constant 0 : index
    %c0_6 = arith.constant 0 : index
    %c0_7 = arith.constant 0 : index
    %8 = vector.load %arg3[%c0_5, %c0_6, %c0_7] : memref<1x4x256xf32, #tpu.memory_space<vmem>>, vector<1x4x256xf32>
    %9 = vector.shape_cast %8 : vector<1x4x256xf32> to vector<4x256xf32>
    %10 = arith.addf %9, %4 : vector<4x256xf32>
    %c0_8 = arith.constant 0 : index
    %c0_9 = arith.constant 0 : index
    %c0_10 = arith.constant 0 : index
    %11 = vector.load %arg4[%c0_8, %c0_9, %c0_10] : memref<1x4x256xf32, #tpu.memory_space<vmem>>, vector<1x4x256xf32>
    %12 = vector.shape_cast %11 : vector<1x4x256xf32> to vector<4x256xf32>
    %13 = vector.shape_cast %10 : vector<4x256xf32> to vector<1x4x256xf32>
    tpu.vector_store %arg4[%c0_8, %c0_9, %c0_10], %13 {strides = array<i32>} : memref<1x4x256xf32, #tpu.memory_space<vmem>>, vector<1x4x256xf32>,
    return
  }
  func.func @transform_0(%arg0: i32, %arg1: i32) -> (i32, i32) {
    %c0_i32 = arith.constant 0 : i32
    %c0_i32_0 = arith.constant 0 : i32
    %c0_i32_1 = arith.constant 0 : i32
    return %c0_i32, %c0_i32_0 : i32, i32
  }
  func.func @transform_1(%arg0: i32, %arg1: i32) -> (i32, i32, i32) {
    %c0_i32 = arith.constant 0 : i32
    %c0_i32_0 = arith.constant 0 : i32
    return %arg1, %arg0, %c0_i32 : i32, i32, i32
  }
  func.func @transform_2(%arg0: i32, %arg1: i32) -> (i32, i32, i32) {
    %c0_i32 = arith.constant 0 : i32
    %c0_i32_0 = arith.constant 0 : i32
    return %arg1, %arg0, %c0_i32 : i32, i32, i32
  }
  func.func @transform_3(%arg0: i32, %arg1: i32) -> (i32, i32, i32) {
    %c0_i32 = arith.constant 0 : i32
    %c0_i32_0 = arith.constant 0 : i32
    return %arg1, %arg0, %c0_i32 : i32, i32, i32
  }
}

</mosaic_0001>

<llo_original>
// kernel: tpu_custom_call.1
$region0: #{tpu_custom_call.1}
  #allocation0 [shape = 'u32[]', space=smem, size = 0x4, offset = 0x4, fixed_abs, tag = 'smem constant byte address 0x4 - core index']
  #allocation1 [shape = 'u32[144,128]{1,0:T(1,128)}', space=vmem, size = 0x12000, scoped, tag = 'internal scratch']
  #allocation2 [shape = 'f32[4,256]{1,0:T(4,128)}', space=vmem, size = 0x1000, scoped, tag = 'scratch operand']
  %s0 = inlined_call_operand.hbm [shape: f32[2,256], index: 0, kind: input, shape index: {}]
  %s1 = inlined_call_operand.hbm [shape: f32[2,4,256], index: 1, kind: input, shape index: {}]
  %s2 = inlined_call_operand.hbm [shape: f32[2,4,256], index: 2, kind: output, shape index: {0}]
  %s3 = inlined_call_operand.hbm [shape: f32[2,4,256], index: 3, kind: output, shape index: {1}]
  %4 = xla_tuple %s2, %s3
  %s5 = sld [smem:[#allocation0]]
  $region61: #{tpu_custom_call.1} parent=0
    _
  %s7 = ssub.s32 1, %s5
  %s8 = scalar_select 0, %s7, %s5
  $region1: #{tpu_custom_call.1} parent=0
    #allocation3 [shape = 'u8[2048]{0}', space=vmem, size = 0x800, scoped, tag = 'input window, operand 0, single buffered']
    #allocation4 [shape = 's32[2]{0}', space=sflag, size = 0x8, scoped, tag = 'scoped memory for tpu_custom_call.1']
    #allocation5 [shape = 's32[2]{0}', space=sflag, size = 0x8, scoped, tag = 'scoped memory for tpu_custom_call.1']
    #allocation6 [shape = 'u8[8192]{0}', space=vmem, size = 0x2000, scoped, tag = 'input window, operand 1']
    #allocation7 [shape = 's32[2]{0}', space=sflag, size = 0x8, scoped, tag = 'scoped memory for tpu_custom_call.1']
    #allocation8 [shape = 'u8[8192]{0}', space=vmem, size = 0x2000, scoped, tag = 'output window, operand 0']
    #allocation9 [shape = 'u8[8192]{0}', space=vmem, size = 0x2000, scoped, tag = 'output window, operand 1']
    #allocation10 [shape = 's32[2]{0}', space=sflag, size = 0x8, scoped, tag = 'scoped memory for tpu_custom_call.1']
    %9 = vsyncpa [#allocation4], 0
    %10 = vsyncpa [#allocation7], 0
    %s11 = scalar_lea.sflag [#allocation7], 1
    %12 = vsyncpa %s11, 0
    %13 = vsyncpa [#allocation5], 0
    %s14 = scalar_lea.sflag [#allocation5], 1
    %15 = vsyncpa %s14, 0
    %16 = vsyncpa [#allocation10], 0
    %s17 = scalar_lea.sflag [#allocation10], 1
    %18 = vsyncpa %s17, 0
    loop: start=0, step=1, limit=4
    $region2: #{tpu_custom_call.1} parent=1 // loop_pre_header
      _
    $region3: #{tpu_custom_call.1} parent=1 // loop_header
      %s20 = sphi 0, %s24
      %p21 = scmp.ge.s32.totalorder %s20, 4
      %s27 = sphi 0, %s39
      %s28 = sphi 0, %s35
      %s29 = sphi 0, %s27
      %s30 = sphi 0, %s28
      %s31 = sphi 0, %s29
      %s32 = sphi 0, %s30
      %s40 = sphi 0, %s40
      %s42 = sphi 0, %s40
      %s43 = sphi 0, %s42
      %s57 = sphi 0, %s43
      %s65 = sphi 0, %s67
      %s68 = sphi 0, %s65
      %s69 = sphi 0, %s68
      %s85 = sphi 0, %s69
      %s93 = sphi 0, %s95
      %s96 = sphi 0, %s93
      %s97 = sphi 0, %s96
      %s113 = sphi 0, %s97
      %s121 = sphi 0, %s123
      %s124 = sphi 0, %s121
      %s125 = sphi 0, %s124
      %s141 = sphi 0, %s125
    $region4: #{tpu_custom_call.1} parent=1 // loop_header_branch
      %23 = sbr.rel (%p21) target = $region8
    $region5: #{tpu_custom_call.1} parent=1 // loop_body
      %s25 = ssub.s32 %s20, 1
      %s26 = ssub.s32 %s20, 2
      %s33 = sadd.s32 1, %s28
      %p34 = scmp.ge.s32.totalorder %s33, 2
      %s35 = scalar_select %p34, 0, %s33
      %s36 = sadd.s32 1, %s27
      %s37 = scalar_select %p34, %s36, %s27
      %p38 = scmp.ge.s32.totalorder %s37, 1
      %s39 = scalar_select %p38, 0, %s37
      %s41 = sadd.s32 %s40, 1
      %p44 = scmp.eq.s32.totalorder %s20, 1
      %p45 = scmp.ne.s32.totalorder %s40, %s42
      %p46 = scmp.eq.s32.totalorder %s20, 0
      %p47 = por %p45, %p46
      %p48 = scmp.ne.s32.totalorder %s40, %s42
      %p49 = scmp.eq.s32.totalorder %s25, 1
      %p50 = por %p48, %p49
      %p51 = scmp.ne.s32.totalorder %s42, %s43
      %p52 = scmp.eq.s32.totalorder %s25, 0
      %p53 = por %p51, %p52
      %p54 = scmp.ne.s32.totalorder %s42, %s43
      %p55 = scmp.eq.s32.totalorder %s26, 1
      %p56 = por %p54, %p55
      %p58 = scmp.ne.s32.totalorder %s43, %s57
      %p59 = scmp.eq.s32.totalorder %s26, 0
      %p60 = por %p58, %p59
      %s61 = ssub.s32 %s28, %s35
      %s62 = ssub.s32 %s27, %s39
      %s63 = sor.u32 %s61, %s62
      %p64 = scmp.eq.s32.totalorder %s63, 0
      %s66 = sadd.s32 %s65, 1
      %s67 = scalar_select %p64, %s65, %s66
      %p70 = pneg %p64
      %p71 = scmp.eq.s32.totalorder %s20, 1
      %p72 = por %p70, %p71
      %p73 = scmp.ne.s32.totalorder %s65, %s68
      %p74 = scmp.eq.s32.totalorder %s20, 0
      %p75 = por %p73, %p74
      %p76 = scmp.ne.s32.totalorder %s65, %s68
      %p77 = scmp.eq.s32.totalorder %s25, 1
      %p78 = por %p76, %p77
      %p79 = scmp.ne.s32.totalorder %s68, %s69
      %p80 = scmp.eq.s32.totalorder %s25, 0
      %p81 = por %p79, %p80
      %p82 = scmp.ne.s32.totalorder %s68, %s69
      %p83 = scmp.eq.s32.totalorder %s26, 1
      %p84 = por %p82, %p83
      %p86 = scmp.ne.s32.totalorder %s69, %s85
      %p87 = scmp.eq.s32.totalorder %s26, 0
      %p88 = por %p86, %p87
      %s89 = ssub.s32 %s28, %s35
      %s90 = ssub.s32 %s27, %s39
      %s91 = sor.u32 %s89, %s90
      %p92 = scmp.eq.s32.totalorder %s91, 0
      %s94 = sadd.s32 %s93, 1
      %s95 = scalar_select %p92, %s93, %s94
      %p98 = pneg %p92
      %p99 = scmp.eq.s32.totalorder %s20, 1
      %p100 = por %p98, %p99
      %p101 = scmp.ne.s32.totalorder %s93, %s96
      %p102 = scmp.eq.s32.totalorder %s20, 0
      %p103 = por %p101, %p102
      %p104 = scmp.ne.s32.totalorder %s93, %s96
      %p105 = scmp.eq.s32.totalorder %s25, 1
      %p106 = por %p104, %p105
      %p107 = scmp.ne.s32.totalorder %s96, %s97
      %p108 = scmp.eq.s32.totalorder %s25, 0
      %p109 = por %p107, %p108
      %p110 = scmp.ne.s32.totalorder %s96, %s97
      %p111 = scmp.eq.s32.totalorder %s26, 1
      %p112 = por %p110, %p111
      %p114 = scmp.ne.s32.totalorder %s97, %s113
      %p115 = scmp.eq.s32.totalorder %s26, 0
      %p116 = por %p114, %p115
      %s117 = ssub.s32 %s28, %s35
      %s118 = ssub.s32 %s27, %s39
      %s119 = sor.u32 %s117, %s118
      %p120 = scmp.eq.s32.totalorder %s119, 0
      %s122 = sadd.s32 %s121, 1
      %s123 = scalar_select %p120, %s121, %s122
      %p126 = pneg %p120
      %p127 = scmp.eq.s32.totalorder %s20, 1
      %p128 = por %p126, %p127
      %p129 = scmp.ne.s32.totalorder %s121, %s124
      %p130 = scmp.eq.s32.totalorder %s20, 0
      %p131 = por %p129, %p130
      %p132 = scmp.ne.s32.totalorder %s121, %s124
      %p133 = scmp.eq.s32.totalorder %s25, 1
      %p134 = por %p132, %p133
      %p135 = scmp.ne.s32.totalorder %s124, %s125
      %p136 = scmp.eq.s32.totalorder %s25, 0
      %p137 = por %p135, %p136
      %p138 = scmp.ne.s32.totalorder %s124, %s125
      %p139 = scmp.eq.s32.totalorder %s26, 1
      %p140 = por %p138, %p139
      %p142 = scmp.ne.s32.totalorder %s125, %s141
      %p143 = scmp.eq.s32.totalorder %s26, 0
      %p144 = por %p142, %p143
      %p145 = scmp.le.s32.totalorder 1, %s20
      %p146 = scmp.lt.s32.totalorder %s20, 3
      %p147 = pnand %p145, %p146
      %p148 = pneg %p147
      // Predicated region
      $region9: #{tpu_custom_call.1} parent=5 // pred_check
        _
      $region10: #{tpu_custom_call.1} parent=5 // pred_check_branch
        %150 = sbr.rel (%p147) target = $region12
      $region11: #{tpu_custom_call.1} parent=5 // pred_region
        %s151 = ssub.s32 %s20, 1
        // Predicated region
        $region13: #{tpu_custom_call.1} parent=11 // pred_check
          %p152 = pneg %p53
        $region14: #{tpu_custom_call.1} parent=11 // pred_check_branch
          %154 = sbr.rel (%p152) target = $region16
        $region15: #{tpu_custom_call.1} parent=11 // pred_region
          %s156 = ssub.s32 64, 64
          %157 = vsyncadd [#allocation4], %s156
          %s159 = sshll.u32 [#allocation3], 4
          %s160 = int_to_ptr.vmem [resolvable:$true] %s159
          %162 = dma.hbm_to_vmem [thread:$0]  %s0, 64, %s160, [#allocation4]
        $region16: #{tpu_custom_call.1} parent=11 // pred_fallthru
          _
      $region12: #{tpu_custom_call.1} parent=5 // pred_fallthru
        _
      %p163 = scmp.lt.s32.totalorder %s20, 2
      // Predicated region
      $region17: #{tpu_custom_call.1} parent=5 // pred_check
        %p164 = pneg %p163
      $region18: #{tpu_custom_call.1} parent=5 // pred_check_branch
        %166 = sbr.rel (%p164) target = $region20
      $region19: #{tpu_custom_call.1} parent=5 // pred_region
        // Predicated region
        $region21: #{tpu_custom_call.1} parent=19 // pred_check
          %p167 = pneg %p75
        $region22: #{tpu_custom_call.1} parent=19 // pred_check_branch
          %169 = sbr.rel (%p167) target = $region24
        $region23: #{tpu_custom_call.1} parent=19 // pred_region
          %s170 = sand.u32 %s65, 1
          %s171 = scalar_lea.sflag [#allocation7], %s170
          %s172 = sand.u32 %s65, 1
          %s173 = smul.addr %s172, 8
          %s174 = scalar_lea.vmem [#allocation6], %s173
          %s176 = ssub.s32 128, 128
          %177 = vsyncadd %s171, %s176
          %s178 = smul.addr %s27, 2
          %s179 = smul.addr %s28, 2
          %s180 = sadd.s32 %s178, %s179
          %s181 = smul.addr %s180, 64
          %s182 = scalar_lea.hbm %s1, %s181
          %s184 = sshll.u32 %s174, 4
          %s185 = int_to_ptr.vmem [resolvable:$true] %s184
          %187 = dma.hbm_to_vmem [thread:$0]  %s182, 128, %s185, %s171
        $region24: #{tpu_custom_call.1} parent=19 // pred_fallthru
          _
      $region20: #{tpu_custom_call.1} parent=5 // pred_fallthru
        _
      %p188 = scmp.le.s32.totalorder 1, %s20
      %p189 = scmp.lt.s32.totalorder %s20, 3
      %p190 = pnand %p188, %p189
      %p191 = pneg %p190
      // Predicated region
      $region25: #{tpu_custom_call.1} parent=5 // pred_check
        _
      $region26: #{tpu_custom_call.1} parent=5 // pred_check_branch
        %193 = sbr.rel (%p190) target = $region28
      $region27: #{tpu_custom_call.1} parent=5 // pred_region
        %s194 = ssub.s32 %s20, 1
        // Predicated region
        $region29: #{tpu_custom_call.1} parent=27 // pred_check
          %p195 = pneg %p53
        $region30: #{tpu_custom_call.1} parent=27 // pred_check_branch
          %197 = sbr.rel (%p195) target = $region32
        $region31: #{tpu_custom_call.1} parent=27 // pred_region
          %198 = dma.done [#allocation4], 64
        $region32: #{tpu_custom_call.1} parent=27 // pred_fallthru
          _
        %s199 = sand.u32 %s68, 1
        %s200 = scalar_lea.sflag [#allocation7], %s199
        %s201 = sand.u32 %s68, 1
        %s202 = smul.addr %s201, 8
        %s203 = scalar_lea.vmem [#allocation6], %s202
        // Predicated region
        $region33: #{tpu_custom_call.1} parent=27 // pred_check
          %p204 = pneg %p81
        $region34: #{tpu_custom_call.1} parent=27 // pred_check_branch
          %206 = sbr.rel (%p204) target = $region36
        $region35: #{tpu_custom_call.1} parent=27 // pred_region
          %207 = dma.done %s200, 128
        $region36: #{tpu_custom_call.1} parent=27 // pred_fallthru
          _
        %p208 = pneg %p53
        %p209 = pneg %p50
        %s210 = sand.u32 %s68, 1
        %s211 = scalar_lea.sflag [#allocation7], %s210
        %s212 = sand.u32 %s68, 1
        %s213 = smul.addr %s212, 8
        %s214 = scalar_lea.vmem [#allocation6], %s213
        %p215 = pneg %p81
        %p216 = pneg %p78
        %p217 = pneg %p109
        %p218 = pneg %p106
        %s219 = sand.u32 %s96, 1
        %s220 = scalar_lea.sflag [#allocation5], %s219
        %s221 = sand.u32 %s96, 1
        %s222 = smul.addr %s221, 8
        %s223 = scalar_lea.vmem [#allocation8], %s222
        %p224 = pneg %p137
        %p225 = pneg %p134
        %s226 = sand.u32 %s124, 1
        %s227 = scalar_lea.sflag [#allocation10], %s226
        %s228 = sand.u32 %s124, 1
        %s229 = smul.addr %s228, 8
        %s230 = scalar_lea.vmem [#allocation9], %s229
        %s231 = smul.u32 %s29, 4
        %p232 = scmp.eq.s32.totalorder %s30, 0
        // Predicated region
        $region37: #{tpu_custom_call.1} parent=27 // pred_check
          %p233 = pneg %p232
        $region38: #{tpu_custom_call.1} parent=27 // pred_check_branch
          %235 = sbr.rel (%p233) target = $region40
        $region39: #{tpu_custom_call.1} parent=27 // pred_region
          %v236 = vld [vmem:[#allocation3] ss:$2 sm:$0x3]
          %s237 = scalar_lea.vmem [#allocation3], 1
          %v238 = vld [vmem:[%s237] ss:$2 sm:$0x3]
          %v239 = vlaneseq
          %v240 = vshrl.u32 %v239, 7
          %v241 = vstv %s231
          %v242 = vadd.s32 %v240, %v241
          %v243 = vcvt.s32.f32 %v242
          %v245 = vlaneseq
          %v246 = vshrl.u32 %v245, 7
          %v247 = vsub.s32 0, %v246
          %v248 = vrot.slane %v236, %v247
          %v249 = vlaneseq
          %v250 = vshrl.u32 %v249, 7
          %v251 = vsub.s32 1, %v250
          %v252 = vrot.slane %v236, %v251
          %v255 = vmul.f32 %v243, %v248
          %v256 = vmul.f32 %v243, %v252
          %v258 = vlaneseq
          %v259 = vshrl.u32 %v258, 7
          %v260 = vsub.s32 0, %v259
          %v261 = vrot.slane %v238, %v260
          %v262 = vlaneseq
          %v263 = vshrl.u32 %v262, 7
          %v264 = vsub.s32 1, %v263
          %v265 = vrot.slane %v238, %v264
          %v268 = vadd.f32 %v255, %v261
          %v269 = vadd.f32 %v256, %v265
          %v270 = vand.u32 2147483647, %v268
          %vm271 = vcmp.le.f32.partialorder %v270, 0.7853982
          %vm272 = vcmp.lt.s32.totalorder %v268, 0
          %v273 = vand.u32 %v268, 2139095040
          %v274 = vshrl.u32 %v273, 23
          %v275 = vsub.s32 %v274, 127
          %v276 = vand.u32 2147483647, %v268
          %v277 = vand.u32 %v276, 8388607
          %v278 = vor.u32 %v277, 8388608
          %v279 = vsub.s32 0, %v278
          %v280 = vadd.s32 %v275, 1
          %vm281 = vcmp.gt.s32.totalorder %v280, 0
          %v282 = vsel %vm281, %v280, 0
          %v283 = vshrl.u32 %v282, 5
          %v284 = vand.u32 %v282, 31
          %v285 = vsub.s32 32, %v284
          %v286 = vshrl.u32 683565275, %v285
          %v287 = vshll.u32 683565275, %v284
          %v288 = vshrl.u32 2475754826, %v285
          %v289 = vor.u32 %v287, %v288
          %v290 = vshll.u32 2475754826, %v284
          %v291 = vshrl.u32 2131351028, %v285
          %v292 = vor.u32 %v290, %v291
          %v293 = vshll.u32 2131351028, %v284
          %v294 = vshrl.u32 2102212464, %v285
          %v295 = vor.u32 %v293, %v294
          %v296 = vshll.u32 2102212464, %v284
          %v297 = vshrl.u32 920167782, %v285
          %v298 = vor.u32 %v296, %v297
          %v299 = vshll.u32 920167782, %v284
          %v300 = vshrl.u32 1326507024, %v285
          %v301 = vor.u32 %v299, %v300
          %vm302 = vcmp.lt.s32.totalorder %v283, 1
          %vm303 = vcmp.lt.s32.totalorder %v283, 2
          %vm304 = vcmp.lt.s32.totalorder %v283, 3
          %vm305 = vcmp.lt.s32.totalorder %v283, 4
          %v306 = vsel %vm302, %v286, %v289
          %v307 = vsel %vm305, %v295, 2102212464
          %v308 = vsel %vm304, %v292, %v307
          %v309 = vsel %vm303, %v306, %v308
          %v310 = vsel %vm302, %v289, %v292
          %v311 = vsel %vm305, %v298, 920167782
          %v312 = vsel %vm304, %v295, %v311
          %v313 = vsel %vm303, %v310, %v312
          %v314 = vsel %vm302, %v292, %v295
          %v315 = vsel %vm305, %v301, 1326507024
          %v316 = vsel %vm304, %v298, %v315
          %v317 = vsel %vm303, %v314, %v316
          %v318 = vshll.u32 %v278, 8
          %v319 = vmul.u32.u64.compose %v318, %v317
          %v320 = vextract.low.u32 %v319
          %v321 = vextract.high.u32 %v319
          %v322 = vmul.u32.u64.compose %v318, %v313
          %v323 = vextract.low.u32 %v322
          %v324 = vextract.high.u32 %v322
          %v325 = vmul.u32 %v318, %v309
          %v326 = vadd.s32 %v321, %v323
          %vm327 = vc.u32 %v321, %v323
          %v328 = vadd.s32 %v324, 1
          %v329 = vsel %vm327, %v328, %v324
          %v330 = vadd.s32 %v325, %v329
          %v331 = vadd.s32 %v330, 536870912
          %v332 = vshrl.u32 %v331, 30
          %v333 = vshll.u32 %v332, 30
          %v334 = vsub.s32 %v330, %v333
          %vm335 = vcmp.lt.s32.totalorder %v334, 0
          %v336 = vsub.s32 0, %v334
          %v337 = vsel %vm335, %v336, %v334
          %v338 = vclz %v337
          %v339 = vsub.s32 %v338, 2
          %vm340 = vcmp.gt.s32.totalorder 0, %v339
          %v341 = vsel %vm340, 0, %v339
          %v342 = vsub.s32 32, %v341
          %v343 = vshll.u32 %v334, %v341
          %v344 = vshrl.u32 %v326, %v342
          %v345 = vor.u32 %v343, %v344
          %v346 = vsub.s32 4294967266, %v341
          %v347 = vadd.s32 %v346, 127
          %v348 = vshll.u32 %v347, 23
          %v349 = vor.u32 4788187, %v348
          %v350 = vand.u32 2147483647, %v349
          %v352 = vcvt.s32.f32 %v345
          %v353 = vmul.f32 %v352, %v350
          %v354 = vxor.u32 %v353, 2147483648
          %v355 = vsel %vm272, %v354, %v353
          %v356 = vsub.s32 4, %v332
          %v357 = vsel %vm272, %v356, %v332
          %v358 = vsel %vm271, %v268, %v355
          %v359 = vsel %vm271, 0, %v357
          %v360 = vcosq.f32.pop %v358
          %v361 = vsinq.f32.pop %v358
          %vm362 = vweird.f32 %v268
          %v363 = vadd.s32 %v359, 3
          %v364 = vand.u32 %v363, 3
          %vm365 = vcmp.lt.s32.totalorder %v364, 2
          %vm366 = vcmp.eq.s32.totalorder %v364, 0
          %v367 = vxor.u32 %v361, 2147483648
          %v368 = vsel %vm366, %v360, %v367
          %vm369 = vcmp.eq.s32.totalorder %v364, 2
          %v370 = vxor.u32 %v360, 2147483648
          %v371 = vsel %vm369, %v370, %v361
          %v372 = vsel %vm365, %v368, %v371
          %v373 = vsel %vm362, nan, %v372
          %v374 = vand.u32 2147483647, %v269
          %vm375 = vcmp.le.f32.partialorder %v374, 0.7853982
          %vm376 = vcmp.lt.s32.totalorder %v269, 0
          %v377 = vand.u32 %v269, 2139095040
          %v378 = vshrl.u32 %v377, 23
          %v379 = vsub.s32 %v378, 127
          %v380 = vand.u32 2147483647, %v269
          %v381 = vand.u32 %v380, 8388607
          %v382 = vor.u32 %v381, 8388608
          %v383 = vsub.s32 0, %v382
          %v384 = vadd.s32 %v379, 1
          %vm385 = vcmp.gt.s32.totalorder %v384, 0
          %v386 = vsel %vm385, %v384, 0
          %v387 = vshrl.u32 %v386, 5
          %v388 = vand.u32 %v386, 31
          %v389 = vsub.s32 32, %v388
          %v390 = vshrl.u32 683565275, %v389
          %v391 = vshll.u32 683565275, %v388
          %v392 = vshrl.u32 2475754826, %v389
          %v393 = vor.u32 %v391, %v392
          %v394 = vshll.u32 2475754826, %v388
          %v395 = vshrl.u32 2131351028, %v389
          %v396 = vor.u32 %v394, %v395
          %v397 = vshll.u32 2131351028, %v388
          %v398 = vshrl.u32 2102212464, %v389
          %v399 = vor.u32 %v397, %v398
          %v400 = vshll.u32 2102212464, %v388
          %v401 = vshrl.u32 920167782, %v389
          %v402 = vor.u32 %v400, %v401
          %v403 = vshll.u32 920167782, %v388
          %v404 = vshrl.u32 1326507024, %v389
          %v405 = vor.u32 %v403, %v404
          %vm406 = vcmp.lt.s32.totalorder %v387, 1
          %vm407 = vcmp.lt.s32.totalorder %v387, 2
          %vm408 = vcmp.lt.s32.totalorder %v387, 3
          %vm409 = vcmp.lt.s32.totalorder %v387, 4
          %v410 = vsel %vm406, %v390, %v393
          %v411 = vsel %vm409, %v399, 2102212464
          %v412 = vsel %vm408, %v396, %v411
          %v413 = vsel %vm407, %v410, %v412
          %v414 = vsel %vm406, %v393, %v396
          %v415 = vsel %vm409, %v402, 920167782
          %v416 = vsel %vm408, %v399, %v415
          %v417 = vsel %vm407, %v414, %v416
          %v418 = vsel %vm406, %v396, %v399
          %v419 = vsel %vm409, %v405, 1326507024
          %v420 = vsel %vm408, %v402, %v419
          %v421 = vsel %vm407, %v418, %v420
          %v422 = vshll.u32 %v382, 8
          %v423 = vmul.u32.u64.compose %v422, %v421
          %v424 = vextract.low.u32 %v423
          %v425 = vextract.high.u32 %v423
          %v426 = vmul.u32.u64.compose %v422, %v417
          %v427 = vextract.low.u32 %v426
          %v428 = vextract.high.u32 %v426
          %v429 = vmul.u32 %v422, %v413
          %v430 = vadd.s32 %v425, %v427
          %vm431 = vc.u32 %v425, %v427
          %v432 = vadd.s32 %v428, 1
          %v433 = vsel %vm431, %v432, %v428
          %v434 = vadd.s32 %v429, %v433
          %v435 = vadd.s32 %v434, 536870912
          %v436 = vshrl.u32 %v435, 30
          %v437 = vshll.u32 %v436, 30
          %v438 = vsub.s32 %v434, %v437
          %vm439 = vcmp.lt.s32.totalorder %v438, 0
          %v440 = vsub.s32 0, %v438
          %v441 = vsel %vm439, %v440, %v438
          %v442 = vclz %v441
          %v443 = vsub.s32 %v442, 2
          %vm444 = vcmp.gt.s32.totalorder 0, %v443
          %v445 = vsel %vm444, 0, %v443
          %v446 = vsub.s32 32, %v445
          %v447 = vshll.u32 %v438, %v445
          %v448 = vshrl.u32 %v430, %v446
          %v449 = vor.u32 %v447, %v448
          %v450 = vsub.s32 4294967266, %v445
          %v451 = vadd.s32 %v450, 127
          %v452 = vshll.u32 %v451, 23
          %v453 = vor.u32 4788187, %v452
          %v454 = vand.u32 2147483647, %v453
          %v456 = vcvt.s32.f32 %v449
          %v457 = vmul.f32 %v456, %v454
          %v458 = vxor.u32 %v457, 2147483648
          %v459 = vsel %vm376, %v458, %v457
          %v460 = vsub.s32 4, %v436
          %v461 = vsel %vm376, %v460, %v436
          %v462 = vsel %vm375, %v269, %v459
          %v463 = vsel %vm375, 0, %v461
          %v464 = vcosq.f32.pop %v462
          %v465 = vsinq.f32.pop %v462
          %vm466 = vweird.f32 %v269
          %v467 = vadd.s32 %v463, 3
          %v468 = vand.u32 %v467, 3
          %vm469 = vcmp.lt.s32.totalorder %v468, 2
          %vm470 = vcmp.eq.s32.totalorder %v468, 0
          %v471 = vxor.u32 %v465, 2147483648
          %v472 = vsel %vm470, %v464, %v471
          %vm473 = vcmp.eq.s32.totalorder %v468, 2
          %v474 = vxor.u32 %v464, 2147483648
          %v475 = vsel %vm473, %v474, %v465
          %v476 = vsel %vm469, %v472, %v475
          %v477 = vsel %vm466, nan, %v476
          %v480 = vcombine.low %v373, %v477
          %482 = vst [vmem:[#allocation2] sm:$0xff] %v480
        $region40: #{tpu_custom_call.1} parent=27 // pred_fallthru
          _
        %v483 = vld [vmem:[#allocation2] sm:$0xff]
        %484 = vst [vmem:[%s230] sm:$0xff] %v483
        %v485 = vld [vmem:[%s203] sm:$0xff]
        %v486 = vadd.f32 %v485, %v483
        %487 = vst [vmem:[%s223] sm:$0xff] %v486
        %s488 = sand.u32 %s96, 1
        %s489 = scalar_lea.sflag [#allocation5], %s488
        %s490 = sand.u32 %s96, 1
        %s491 = smul.addr %s490, 8
        %s492 = scalar_lea.vmem [#allocation8], %s491
        %s493 = sand.u32 %s124, 1
        %s494 = scalar_lea.sflag [#allocation10], %s493
        %s495 = sand.u32 %s124, 1
        %s496 = smul.addr %s495, 8
        %s497 = scalar_lea.vmem [#allocation9], %s496
        // Predicated region
        $region41: #{tpu_custom_call.1} parent=27 // pred_check
          %p498 = pneg %p106
        $region42: #{tpu_custom_call.1} parent=27 // pred_check_branch
          %500 = sbr.rel (%p498) target = $region44
        $region43: #{tpu_custom_call.1} parent=27 // pred_region
          %s502 = ssub.s32 128, 128
          %503 = vsyncadd %s489, %s502
          %s504 = smul.addr %s29, 2
          %s505 = smul.addr %s30, 2
          %s506 = sadd.s32 %s504, %s505
          %s507 = smul.addr %s506, 64
          %s508 = scalar_lea.hbm %s2, %s507
          %s510 = sshll.u32 %s492, 4
          %s511 = int_to_ptr.vmem [resolvable:$true] %s510
          %513 = dma.vmem_to_hbm [thread:$0]  %s511, 128, %s508, %s489
        $region44: #{tpu_custom_call.1} parent=27 // pred_fallthru
          _
        // Predicated region
        $region45: #{tpu_custom_call.1} parent=27 // pred_check
          %p514 = pneg %p134
        $region46: #{tpu_custom_call.1} parent=27 // pred_check_branch
          %516 = sbr.rel (%p514) target = $region48
        $region47: #{tpu_custom_call.1} parent=27 // pred_region
          %s518 = ssub.s32 128, 128
          %519 = vsyncadd %s494, %s518
          %s520 = smul.addr %s29, 2
          %s521 = smul.addr %s30, 2
          %s522 = sadd.s32 %s520, %s521
          %s523 = smul.addr %s522, 64
          %s524 = scalar_lea.hbm %s3, %s523
          %s526 = sshll.u32 %s497, 4
          %s527 = int_to_ptr.vmem [resolvable:$true] %s526
          %529 = dma.vmem_to_hbm [thread:$0]  %s527, 128, %s524, %s494
        $region48: #{tpu_custom_call.1} parent=27 // pred_fallthru
          _
      $region28: #{tpu_custom_call.1} parent=5 // pred_fallthru
        _
      %p530 = scmp.le.s32.totalorder 2, %s20
      // Predicated region
      $region49: #{tpu_custom_call.1} parent=5 // pred_check
        %p531 = pneg %p530
      $region50: #{tpu_custom_call.1} parent=5 // pred_check_branch
        %533 = sbr.rel (%p531) target = $region52
      $region51: #{tpu_custom_call.1} parent=5 // pred_region
        %s534 = ssub.s32 %s20, 2
        // Predicated region
        $region53: #{tpu_custom_call.1} parent=51 // pred_check
          %p535 = pneg %p112
        $region54: #{tpu_custom_call.1} parent=51 // pred_check_branch
          %537 = sbr.rel (%p535) target = $region56
        $region55: #{tpu_custom_call.1} parent=51 // pred_region
          %s538 = sand.u32 %s97, 1
          %s539 = scalar_lea.sflag [#allocation5], %s538
          %s540 = sand.u32 %s97, 1
          %s541 = smul.addr %s540, 8
          %s542 = scalar_lea.vmem [#allocation8], %s541
          %543 = dma.done %s539, 128
        $region56: #{tpu_custom_call.1} parent=51 // pred_fallthru
          _
        // Predicated region
        $region57: #{tpu_custom_call.1} parent=51 // pred_check
          %p544 = pneg %p140
        $region58: #{tpu_custom_call.1} parent=51 // pred_check_branch
          %546 = sbr.rel (%p544) target = $region60
        $region59: #{tpu_custom_call.1} parent=51 // pred_region
          %s547 = sand.u32 %s125, 1
          %s548 = scalar_lea.sflag [#allocation10], %s547
          %s549 = sand.u32 %s125, 1
          %s550 = smul.addr %s549, 8
          %s551 = scalar_lea.vmem [#allocation9], %s550
          %552 = dma.done %s548, 128
        $region60: #{tpu_custom_call.1} parent=51 // pred_fallthru
          _
      $region52: #{tpu_custom_call.1} parent=5 // pred_fallthru
        _
    $region6: #{tpu_custom_call.1} parent=1 // loop_footer
      %s24 = sadd.s32 1, %s20
    $region7: #{tpu_custom_call.1} parent=1 // loop_footer_branch
      %19 = sbr.rel target = $region3
    $region8: #{tpu_custom_call.1} parent=1 // loop_exit
      _
    %553 = vsyncpa [#allocation4], 1
    %s554 = scalar_lea.sflag [#allocation4], 1
    %555 = vsyncpa %s554, 1
    %556 = vsyncpa [#allocation7], 1
    %s557 = scalar_lea.sflag [#allocation7], 1
    %558 = vsyncpa %s557, 1
    %559 = vsyncpa [#allocation5], 1
    %s560 = scalar_lea.sflag [#allocation5], 1
    %561 = vsyncpa %s560, 1
    %562 = vsyncpa [#allocation10], 1
    %s563 = scalar_lea.sflag [#allocation10], 1
    %564 = vsyncpa %s563, 1

</llo_original>
